<compile_context>
chip_gen: v7x
topology: tpu7x:2x2x1
jax: 0.10.0
libtpu: 0.0.40
codegen_flags: <defaults>
</compile_context>

<pallas_src>
import math
import random

import jax
import jax.numpy as jnp
from jax.experimental import pallas as pl
from jax.experimental.pallas import tpu as pltpu

# Method-name constants (undefined symbols in the reference source).
NONE = "none"
SINGLE_MODALITY = "single_modality"
MOOD_MODALITY = "mood_modality"
SINGLE_OR_MOOD = "single_or_mood"

# Host-decided modes.
MODE_PASSTHROUGH = 0
MODE_SINGLE = 1        # strong modality -> zeros (no kernel needed)
MODE_MOOD = 2          # strong modality -> (mod1 + mod2) / 2 (Pallas kernel)

# ~4 MiB per buffer: measured f32 elementwise data shows ~86% of HBM roofline
# at this size, and fewer grid steps -> less ~0.35us/step fixed overhead.
_TARGET_TILE_BYTES = 4 << 20
# Pipeline footprint = 3 arrays x 2 buffers x 4 MiB = 24 MiB; 48 MiB gives
# headroom, exceeds v5e's 16 MiB default scoped limit, and stays under v7x's
# 64 MiB physical VMEM.
_VMEM_LIMIT_BYTES = 48 << 20
# Below this per-input size, skip pallas_call: dispatch + pipeline prologue
# would dominate; XLA's fused elementwise op is already at roofline.
_PALLAS_MIN_BYTES = 256 << 10


def equals(str1, str2):
    return str1.casefold() == str2.casefold()


def _sublane_multiple(dtype) -> int:
    """Dtype-specific sublane packing multiple: 8 (f32), 16 (bf16/fp16), 32 (int8)."""
    itemsize = jnp.dtype(dtype).itemsize
    return 8 * max(1, 4 // itemsize)


# -----------------------------------------------------------------------------
# Pallas kernel: elementwise average of the two modalities (single output).
# -----------------------------------------------------------------------------
def _mood_kernel(m1_ref, m2_ref, out_ref):
    # Accumulate in f32: avoids fp16 overflow of (m1 + m2) before the *0.5 and
    # is free here (VPU has huge slack; the kernel is HBM-bound).
    a = m1_ref[...].astype(jnp.float32)
    b = m2_ref[...].astype(jnp.float32)
    out_ref[...] = ((a + b) * 0.5).astype(out_ref.dtype)


def _choose_view(shape, dtype):
    """Copy-free (rows, lanes) 2-D view of a contiguous tensor.

    Prefers a lane-dense slab (lanes a multiple of 128, rows a multiple of the
    dtype's sublane packing) when the element count allows it — unmasked wide
    stores, no padding. Otherwise falls back to (prod(leading), last_dim),
    still a free reshape (full-extent last-dim blocks, possibly masked stores,
    but zero extra HBM traffic)."""
    total = math.prod(shape) if shape else 1
    sub = _sublane_multiple(dtype)
    if total % 128 == 0:
        for lanes in (1024, 512, 256, 128):
            if total % lanes == 0 and (total // lanes) % sub == 0:
                return total // lanes, lanes
        for lanes in (1024, 512, 256, 128):
            if total % lanes == 0:
                return total // lanes, lanes
    if len(shape) >= 2:
        return total // shape[-1], shape[-1]
    return 1, total


def _mood_average_pallas(mod1, mod2):
    """(mod1 + mod2) / 2 via the Pallas kernel, copy-free for any shape."""
    assert mod1.shape == mod2.shape and mod1.dtype == mod2.dtype
    orig_shape = mod1.shape
    dtype = mod1.dtype
    rows, lanes = _choose_view(orig_shape, dtype)
    m1 = mod1.reshape(rows, lanes)     # free reshape (row-major contiguous)
    m2 = mod2.reshape(rows, lanes)

    itemsize = jnp.dtype(dtype).itemsize
    sub = _sublane_multiple(dtype)
    target_rows = max(sub, _TARGET_TILE_BYTES // (lanes * itemsize))
    tile_r = min(rows, target_rows)
    if tile_r < rows:
        # When actually tiling rows, round to the dtype sublane multiple so
        # every block's stores are unmasked (partial last block is handled by
        # Pallas's ragged-boundary masking).
        tile_r = max(sub, (tile_r // sub) * sub)
    grid = (pl.cdiv(rows, tile_r),)

    spec = pl.BlockSpec((tile_r, lanes), lambda i: (i, 0))
    out = pl.pallas_call(
        _mood_kernel,
        out_shape=jax.ShapeDtypeStruct((rows, lanes), dtype),
        grid=grid,
        in_specs=[spec, spec],
        out_specs=spec,
        compiler_params=pltpu.CompilerParams(
            dimension_semantics=("parallel",),
            vmem_limit_bytes=_VMEM_LIMIT_BYTES),
    )(m1, m2)
    return out.reshape(orig_shape)


def _mood_average(mod1, mod2):
    """MOOD average with a small-input fallback (dispatch overhead dominates)."""
    total = math.prod(mod1.shape) if mod1.shape else 1
    nbytes = total * jnp.dtype(mod1.dtype).itemsize
    if nbytes < _PALLAS_MIN_BYTES:
        return ((mod1.astype(jnp.float32) + mod2.astype(jnp.float32)) * 0.5
                ).astype(mod1.dtype)
    return _mood_average_pallas(mod1, mod2)


# -----------------------------------------------------------------------------
# Module wrapper
# -----------------------------------------------------------------------------
class ModalityRegularizer:
    """JAX/Pallas port of the PyTorch ModalityRegularizer forward pass."""

    def __init__(self, strong_modality_no: int = 0,
                 regularization_method: str = NONE, prob: int = 5):
        self.method = (regularization_method
                       if regularization_method is not None else "")
        self.strong_modality_no = strong_modality_no
        self.prob = prob

    def _decide_mode(self):
        dice = random.randint(0, self.prob)
        if dice == 0 or dice == 2:
            if equals(self.method, SINGLE_MODALITY):
                return MODE_SINGLE
            if equals(self.method, MOOD_MODALITY):
                return MODE_MOOD
            if equals(self.method, SINGLE_OR_MOOD):
                return (MODE_MOOD if bool(random.getrandbits(1))
                        else MODE_SINGLE)
        return MODE_PASSTHROUGH

    def __call__(self, mod1, mod2):
        assert mod1.shape == mod2.shape
        mode = self._decide_mode()
        mods = [mod1, mod2]
        if mode == MODE_SINGLE:
            # Pure zero fill: no kernel launch, inputs never read.
            mods[self.strong_modality_no] = jnp.zeros_like(
                mods[self.strong_modality_no])
        elif mode == MODE_MOOD:
            # Only the strong modality is rewritten (2 reads + 1 write); the
            # other modality passes through untouched.
            mods[self.strong_modality_no] = _mood_average(mod1, mod2)
        # MODE_PASSTHROUGH: return inputs as-is, zero HBM traffic.
        return mods[0], mods[1]


if __name__ == "__main__":
    random.seed(0)   # deterministic host-side dice
    key = jax.random.PRNGKey(0)
    k1, k2, k3, k4, k5, k6 = jax.random.split(key, 6)

    # --- module semantics on a small NCHW activation (batch=2, ch=4, 16x16) ---
    mod1 = jax.random.normal(k1, (2, 4, 16, 16), dtype=jnp.float32)
    mod2 = jax.random.normal(k2, (2, 4, 16, 16), dtype=jnp.float32)

    # MOOD mode (prob=0 -> dice always 0 -> mood path).
    reg_mood = ModalityRegularizer(strong_modality_no=0,
                                   regularization_method=MOOD_MODALITY,
                                   prob=0)
    o1, o2 = reg_mood(mod1, mod2)
    jax.block_until_ready(o1)
    jax.block_until_ready(o2)
    assert bool(jnp.allclose(o1, (mod1 + mod2) * 0.5, atol=1e-6))
    assert bool(jnp.allclose(o2, mod2, atol=1e-6))

    # SINGLE mode (strong modality replaced by zeros; no kernel launch).
    reg_single = ModalityRegularizer(strong_modality_no=1,
                                     regularization_method=SINGLE_MODALITY,
                                     prob=0)
    s1, s2 = reg_single(mod1, mod2)
    jax.block_until_ready(s2)
    assert bool(jnp.allclose(s1, mod1, atol=1e-6))
    assert bool(jnp.allclose(s2, jnp.zeros_like(mod2), atol=1e-6))

    # Passthrough (method NONE -> inputs returned untouched).
    reg_none = ModalityRegularizer(strong_modality_no=0,
                                   regularization_method=NONE, prob=0)
    p1, p2 = reg_none(mod1, mod2)
    assert p1 is mod1 and p2 is mod2

    # --- Pallas kernel path: lane-aligned slab (copy-free, lane-dense) ---
    a = jax.random.normal(k3, (2, 4, 64, 128), dtype=jnp.float32)
    b = jax.random.normal(k4, (2, 4, 64, 128), dtype=jnp.float32)
    avg = _mood_average_pallas(a, b)
    jax.block_until_ready(avg)
    assert bool(jnp.allclose(avg, (a + b) * 0.5, atol=1e-6))

    # --- Pallas kernel path: unaligned element count (copy-free, full last dim) ---
    c = jax.random.normal(k5, (2, 3, 17, 16), dtype=jnp.float32)
    d = jax.random.normal(k6, (2, 3, 17, 16), dtype=jnp.float32)
    avg2 = _mood_average_pallas(c, d)
    jax.block_until_ready(avg2)
    assert bool(jnp.allclose(avg2, (c + d) * 0.5, atol=1e-6))

    print("KERNEL_OK")
</pallas_src>

<mosaic_0001>
module attributes {stable_mosaic.version = 11 : i64} {
  func.func @_mood_kernel(%arg0: i32, %arg1: memref<64x1024xf32, #tpu.memory_space<vmem>>, %arg2: memref<64x1024xf32, #tpu.memory_space<vmem>>, %arg3: memref<64x1024xf32, #tpu.memory_space<vmem>>) attributes {dimension_semantics = [#tpu.dimension_semantics<parallel>], iteration_bounds = array<i64: 1>, scalar_prefetch = 0 : i64, scratch_operands = 0 : i64, tpu.core_type = #tpu.core_type<tc>, window_params = [{transform_indices = @transform_0, window_bounds = array<i64: 64, 1024>}, {transform_indices = @transform_1, window_bounds = array<i64: 64, 1024>}, {transform_indices = @transform_2, window_bounds = array<i64: 64, 1024>}]} {
    %c0 = arith.constant 0 : index
    %c0_0 = arith.constant 0 : index
    %0 = vector.load %arg1[%c0, %c0_0] : memref<64x1024xf32, #tpu.memory_space<vmem>>, vector<64x1024xf32>
    %c0_1 = arith.constant 0 : index
    %c0_2 = arith.constant 0 : index
    %1 = vector.load %arg2[%c0_1, %c0_2] : memref<64x1024xf32, #tpu.memory_space<vmem>>, vector<64x1024xf32>
    %2 = arith.addf %0, %1 : vector<64x1024xf32>
    %cst = arith.constant 5.000000e-01 : f32
    %3 = vector.broadcast %cst : f32 to vector<64x1024xf32>
    %4 = arith.mulf %2, %3 : vector<64x1024xf32>
    %c0_3 = arith.constant 0 : index
    %c0_4 = arith.constant 0 : index
    %5 = vector.load %arg3[%c0_3, %c0_4] : memref<64x1024xf32, #tpu.memory_space<vmem>>, vector<64x1024xf32>
    tpu.vector_store %arg3[%c0_3, %c0_4], %4 {strides = array<i32>} : memref<64x1024xf32, #tpu.memory_space<vmem>>, vector<64x1024xf32>,
    return
  }
  func.func @transform_0(%arg0: i32) -> (i32, i32) {
    %c0_i32 = arith.constant 0 : i32
    %c0_i32_0 = arith.constant 0 : i32
    return %arg0, %c0_i32 : i32, i32
  }
  func.func @transform_1(%arg0: i32) -> (i32, i32) {
    %c0_i32 = arith.constant 0 : i32
    %c0_i32_0 = arith.constant 0 : i32
    return %arg0, %c0_i32 : i32, i32
  }
  func.func @transform_2(%arg0: i32) -> (i32, i32) {
    %c0_i32 = arith.constant 0 : i32
    %c0_i32_0 = arith.constant 0 : i32
    return %arg0, %c0_i32 : i32, i32
  }
}

</mosaic_0001>

<llo_original>
// kernel: tpu_custom_call.1
$region0: #{tpu_custom_call.1}
  #allocation0 [shape = 'u32[]', space=smem, size = 0x4, offset = 0x4, fixed_abs, tag = 'smem constant byte address 0x4 - core index']
  #allocation1 [shape = 'u32[144,128]{1,0:T(1,128)}', space=vmem, size = 0x12000, scoped, tag = 'internal scratch']
  %s0 = inlined_call_operand.hbm [shape: f32[64,1024], index: 0, kind: input, shape index: {}]
  %s1 = inlined_call_operand.hbm [shape: f32[64,1024], index: 1, kind: input, shape index: {}]
  %s2 = inlined_call_operand.hbm [shape: f32[64,1024], index: 2, kind: output, shape index: {}]
  %s3 = sld [smem:[#allocation0]]
  $region26: #{tpu_custom_call.1} parent=0
    _
  %s5 = ssub.s32 1, %s3
  %s6 = scalar_select 0, %s5, %s3
  $region1: #{tpu_custom_call.1} parent=0
    #allocation2 [shape = 'u8[262144]{0}', space=vmem, size = 0x40000, scoped, tag = 'input window, operand 0, single buffered']
    #allocation3 [shape = 's32[1]{0}', space=sflag, size = 0x4, scoped, tag = 'scoped memory for tpu_custom_call.1']
    #allocation4 [shape = 's32[1]{0}', space=sflag, size = 0x4, scoped, tag = 'scoped memory for tpu_custom_call.1']
    #allocation5 [shape = 'u8[262144]{0}', space=vmem, size = 0x40000, scoped, tag = 'input window, operand 1, single buffered']
    #allocation6 [shape = 's32[1]{0}', space=sflag, size = 0x4, scoped, tag = 'scoped memory for tpu_custom_call.1']
    #allocation7 [shape = 'u8[262144]{0}', space=vmem, size = 0x40000, scoped, tag = 'output window, operand 0, single buffered']
    %7 = vsyncpa [#allocation3], 0
    %8 = vsyncpa [#allocation6], 0
    %9 = vsyncpa [#allocation4], 0
    // Predicated region
    $region2: #{tpu_custom_call.1} parent=1 // pred_check
      _
    $region3: #{tpu_custom_call.1} parent=1 // pred_check_branch
      %11 = sbr.rel (0) target = $region5
    $region4: #{tpu_custom_call.1} parent=1 // pred_region
      %s13 = ssub.s32 8192, 8192
      %14 = vsyncadd [#allocation3], %s13
      %s15 = sshll.u32 [#allocation2], 4
      %s16 = int_to_ptr.vmem [resolvable:$true] %s15
      %21 = dma.hbm_to_vmem [thread:$0]  %s0, 8192, %s16, [#allocation3], 1024, 1024, 64
    $region5: #{tpu_custom_call.1} parent=1 // pred_fallthru
      _
    // Predicated region
    $region6: #{tpu_custom_call.1} parent=1 // pred_check
      _
    $region7: #{tpu_custom_call.1} parent=1 // pred_check_branch
      %23 = sbr.rel (0) target = $region9
    $region8: #{tpu_custom_call.1} parent=1 // pred_region
      %s25 = ssub.s32 8192, 8192
      %26 = vsyncadd [#allocation6], %s25
      %s27 = sshll.u32 [#allocation5], 4
      %s28 = int_to_ptr.vmem [resolvable:$true] %s27
      %33 = dma.hbm_to_vmem [thread:$0]  %s1, 8192, %s28, [#allocation6], 1024, 1024, 64
    $region9: #{tpu_custom_call.1} parent=1 // pred_fallthru
      _
    // Predicated region
    $region10: #{tpu_custom_call.1} parent=1 // pred_check
      _
    $region11: #{tpu_custom_call.1} parent=1 // pred_check_branch
      %35 = sbr.rel (0) target = $region13
    $region12: #{tpu_custom_call.1} parent=1 // pred_region
      %36 = dma.done [#allocation3], 8192
    $region13: #{tpu_custom_call.1} parent=1 // pred_fallthru
      _
    // Predicated region
    $region14: #{tpu_custom_call.1} parent=1 // pred_check
      _
    $region15: #{tpu_custom_call.1} parent=1 // pred_check_branch
      %38 = sbr.rel (0) target = $region17
    $region16: #{tpu_custom_call.1} parent=1 // pred_region
      %39 = dma.done [#allocation6], 8192
    $region17: #{tpu_custom_call.1} parent=1 // pred_fallthru
      _
    %v40 = vld [vmem:[#allocation2] sm:$0xff]
    %v41 = vld [vmem:[#allocation2 + $0x8] sm:$0xff]
    %v42 = vld [vmem:[#allocation2 + $0x10] sm:$0xff]
    %v43 = vld [vmem:[#allocation2 + $0x18] sm:$0xff]
    %v44 = vld [vmem:[#allocation2 + $0x20] sm:$0xff]
    %v45 = vld [vmem:[#allocation2 + $0x28] sm:$0xff]
    %v46 = vld [vmem:[#allocation2 + $0x30] sm:$0xff]
    %v47 = vld [vmem:[#allocation2 + $0x38] sm:$0xff]
    %v48 = vld [vmem:[#allocation2 + $0x40] sm:$0xff]
    %v49 = vld [vmem:[#allocation2 + $0x48] sm:$0xff]
    %v50 = vld [vmem:[#allocation2 + $0x50] sm:$0xff]
    %v51 = vld [vmem:[#allocation2 + $0x58] sm:$0xff]
    %v52 = vld [vmem:[#allocation2 + $0x60] sm:$0xff]
    %v53 = vld [vmem:[#allocation2 + $0x68] sm:$0xff]
    %v54 = vld [vmem:[#allocation2 + $0x70] sm:$0xff]
    %v55 = vld [vmem:[#allocation2 + $0x78] sm:$0xff]
    %v56 = vld [vmem:[#allocation2 + $0x80] sm:$0xff]
    %v57 = vld [vmem:[#allocation2 + $0x88] sm:$0xff]
    %v58 = vld [vmem:[#allocation2 + $0x90] sm:$0xff]
    %v59 = vld [vmem:[#allocation2 + $0x98] sm:$0xff]
    %v60 = vld [vmem:[#allocation2 + $0xa0] sm:$0xff]
    %v61 = vld [vmem:[#allocation2 + $0xa8] sm:$0xff]
    %v62 = vld [vmem:[#allocation2 + $0xb0] sm:$0xff]
    %v63 = vld [vmem:[#allocation2 + $0xb8] sm:$0xff]
    %v64 = vld [vmem:[#allocation2 + $0xc0] sm:$0xff]
    %v65 = vld [vmem:[#allocation2 + $0xc8] sm:$0xff]
    %v66 = vld [vmem:[#allocation2 + $0xd0] sm:$0xff]
    %v67 = vld [vmem:[#allocation2 + $0xd8] sm:$0xff]
    %v68 = vld [vmem:[#allocation2 + $0xe0] sm:$0xff]
    %v69 = vld [vmem:[#allocation2 + $0xe8] sm:$0xff]
    %v70 = vld [vmem:[#allocation2 + $0xf0] sm:$0xff]
    %v71 = vld [vmem:[#allocation2 + $0xf8] sm:$0xff]
    %v72 = vld [vmem:[#allocation2 + $0x100] sm:$0xff]
    %v73 = vld [vmem:[#allocation2 + $0x108] sm:$0xff]
    %v74 = vld [vmem:[#allocation2 + $0x110] sm:$0xff]
    %v75 = vld [vmem:[#allocation2 + $0x118] sm:$0xff]
    %v76 = vld [vmem:[#allocation2 + $0x120] sm:$0xff]
    %v77 = vld [vmem:[#allocation2 + $0x128] sm:$0xff]
    %v78 = vld [vmem:[#allocation2 + $0x130] sm:$0xff]
    %v79 = vld [vmem:[#allocation2 + $0x138] sm:$0xff]
    %v80 = vld [vmem:[#allocation2 + $0x140] sm:$0xff]
    %v81 = vld [vmem:[#allocation2 + $0x148] sm:$0xff]
    %v82 = vld [vmem:[#allocation2 + $0x150] sm:$0xff]
    %v83 = vld [vmem:[#allocation2 + $0x158] sm:$0xff]
    %v84 = vld [vmem:[#allocation2 + $0x160] sm:$0xff]
    %v85 = vld [vmem:[#allocation2 + $0x168] sm:$0xff]
    %v86 = vld [vmem:[#allocation2 + $0x170] sm:$0xff]
    %v87 = vld [vmem:[#allocation2 + $0x178] sm:$0xff]
    %v88 = vld [vmem:[#allocation2 + $0x180] sm:$0xff]
    %v89 = vld [vmem:[#allocation2 + $0x188] sm:$0xff]
    %v90 = vld [vmem:[#allocation2 + $0x190] sm:$0xff]
    %v91 = vld [vmem:[#allocation2 + $0x198] sm:$0xff]
    %v92 = vld [vmem:[#allocation2 + $0x1a0] sm:$0xff]
    %v93 = vld [vmem:[#allocation2 + $0x1a8] sm:$0xff]
    %v94 = vld [vmem:[#allocation2 + $0x1b0] sm:$0xff]
    %v95 = vld [vmem:[#allocation2 + $0x1b8] sm:$0xff]
    %v96 = vld [vmem:[#allocation2 + $0x1c0] sm:$0xff]
    %v97 = vld [vmem:[#allocation2 + $0x1c8] sm:$0xff]
    %v98 = vld [vmem:[#allocation2 + $0x1d0] sm:$0xff]
    %v99 = vld [vmem:[#allocation2 + $0x1d8] sm:$0xff]
    %v100 = vld [vmem:[#allocation2 + $0x1e0] sm:$0xff]
    %v101 = vld [vmem:[#allocation2 + $0x1e8] sm:$0xff]
    %v102 = vld [vmem:[#allocation2 + $0x1f0] sm:$0xff]
    %v103 = vld [vmem:[#allocation2 + $0x1f8] sm:$0xff]
    %v104 = vld [vmem:[#allocation5] sm:$0xff]
    %v105 = vld [vmem:[#allocation5 + $0x8] sm:$0xff]
    %v106 = vld [vmem:[#allocation5 + $0x10] sm:$0xff]
    %v107 = vld [vmem:[#allocation5 + $0x18] sm:$0xff]
    %v108 = vld [vmem:[#allocation5 + $0x20] sm:$0xff]
    %v109 = vld [vmem:[#allocation5 + $0x28] sm:$0xff]
    %v110 = vld [vmem:[#allocation5 + $0x30] sm:$0xff]
    %v111 = vld [vmem:[#allocation5 + $0x38] sm:$0xff]
    %v112 = vld [vmem:[#allocation5 + $0x40] sm:$0xff]
    %v113 = vld [vmem:[#allocation5 + $0x48] sm:$0xff]
    %v114 = vld [vmem:[#allocation5 + $0x50] sm:$0xff]
    %v115 = vld [vmem:[#allocation5 + $0x58] sm:$0xff]
    %v116 = vld [vmem:[#allocation5 + $0x60] sm:$0xff]
    %v117 = vld [vmem:[#allocation5 + $0x68] sm:$0xff]
    %v118 = vld [vmem:[#allocation5 + $0x70] sm:$0xff]
    %v119 = vld [vmem:[#allocation5 + $0x78] sm:$0xff]
    %v120 = vld [vmem:[#allocation5 + $0x80] sm:$0xff]
    %v121 = vld [vmem:[#allocation5 + $0x88] sm:$0xff]
    %v122 = vld [vmem:[#allocation5 + $0x90] sm:$0xff]
    %v123 = vld [vmem:[#allocation5 + $0x98] sm:$0xff]
    %v124 = vld [vmem:[#allocation5 + $0xa0] sm:$0xff]
    %v125 = vld [vmem:[#allocation5 + $0xa8] sm:$0xff]
    %v126 = vld [vmem:[#allocation5 + $0xb0] sm:$0xff]
    %v127 = vld [vmem:[#allocation5 + $0xb8] sm:$0xff]
    %v128 = vld [vmem:[#allocation5 + $0xc0] sm:$0xff]
    %v129 = vld [vmem:[#allocation5 + $0xc8] sm:$0xff]
    %v130 = vld [vmem:[#allocation5 + $0xd0] sm:$0xff]
    %v131 = vld [vmem:[#allocation5 + $0xd8] sm:$0xff]
    %v132 = vld [vmem:[#allocation5 + $0xe0] sm:$0xff]
    %v133 = vld [vmem:[#allocation5 + $0xe8] sm:$0xff]
    %v134 = vld [vmem:[#allocation5 + $0xf0] sm:$0xff]
    %v135 = vld [vmem:[#allocation5 + $0xf8] sm:$0xff]
    %v136 = vld [vmem:[#allocation5 + $0x100] sm:$0xff]
    %v137 = vld [vmem:[#allocation5 + $0x108] sm:$0xff]
    %v138 = vld [vmem:[#allocation5 + $0x110] sm:$0xff]
    %v139 = vld [vmem:[#allocation5 + $0x118] sm:$0xff]
    %v140 = vld [vmem:[#allocation5 + $0x120] sm:$0xff]
    %v141 = vld [vmem:[#allocation5 + $0x128] sm:$0xff]
    %v142 = vld [vmem:[#allocation5 + $0x130] sm:$0xff]
    %v143 = vld [vmem:[#allocation5 + $0x138] sm:$0xff]
    %v144 = vld [vmem:[#allocation5 + $0x140] sm:$0xff]
    %v145 = vld [vmem:[#allocation5 + $0x148] sm:$0xff]
    %v146 = vld [vmem:[#allocation5 + $0x150] sm:$0xff]
    %v147 = vld [vmem:[#allocation5 + $0x158] sm:$0xff]
    %v148 = vld [vmem:[#allocation5 + $0x160] sm:$0xff]
    %v149 = vld [vmem:[#allocation5 + $0x168] sm:$0xff]
    %v150 = vld [vmem:[#allocation5 + $0x170] sm:$0xff]
    %v151 = vld [vmem:[#allocation5 + $0x178] sm:$0xff]
    %v152 = vld [vmem:[#allocation5 + $0x180] sm:$0xff]
    %v153 = vld [vmem:[#allocation5 + $0x188] sm:$0xff]
    %v154 = vld [vmem:[#allocation5 + $0x190] sm:$0xff]
    %v155 = vld [vmem:[#allocation5 + $0x198] sm:$0xff]
    %v156 = vld [vmem:[#allocation5 + $0x1a0] sm:$0xff]
    %v157 = vld [vmem:[#allocation5 + $0x1a8] sm:$0xff]
    %v158 = vld [vmem:[#allocation5 + $0x1b0] sm:$0xff]
    %v159 = vld [vmem:[#allocation5 + $0x1b8] sm:$0xff]
    %v160 = vld [vmem:[#allocation5 + $0x1c0] sm:$0xff]
    %v161 = vld [vmem:[#allocation5 + $0x1c8] sm:$0xff]
    %v162 = vld [vmem:[#allocation5 + $0x1d0] sm:$0xff]
    %v163 = vld [vmem:[#allocation5 + $0x1d8] sm:$0xff]
    %v164 = vld [vmem:[#allocation5 + $0x1e0] sm:$0xff]
    %v165 = vld [vmem:[#allocation5 + $0x1e8] sm:$0xff]
    %v166 = vld [vmem:[#allocation5 + $0x1f0] sm:$0xff]
    %v167 = vld [vmem:[#allocation5 + $0x1f8] sm:$0xff]
    %v168 = vadd.f32 %v40, %v104
    %v169 = vadd.f32 %v41, %v105
    %v170 = vadd.f32 %v42, %v106
    %v171 = vadd.f32 %v43, %v107
    %v172 = vadd.f32 %v44, %v108
    %v173 = vadd.f32 %v45, %v109
    %v174 = vadd.f32 %v46, %v110
    %v175 = vadd.f32 %v47, %v111
    %v176 = vadd.f32 %v48, %v112
    %v177 = vadd.f32 %v49, %v113
    %v178 = vadd.f32 %v50, %v114
    %v179 = vadd.f32 %v51, %v115
    %v180 = vadd.f32 %v52, %v116
    %v181 = vadd.f32 %v53, %v117
    %v182 = vadd.f32 %v54, %v118
    %v183 = vadd.f32 %v55, %v119
    %v184 = vadd.f32 %v56, %v120
    %v185 = vadd.f32 %v57, %v121
    %v186 = vadd.f32 %v58, %v122
    %v187 = vadd.f32 %v59, %v123
    %v188 = vadd.f32 %v60, %v124
    %v189 = vadd.f32 %v61, %v125
    %v190 = vadd.f32 %v62, %v126
    %v191 = vadd.f32 %v63, %v127
    %v192 = vadd.f32 %v64, %v128
    %v193 = vadd.f32 %v65, %v129
    %v194 = vadd.f32 %v66, %v130
    %v195 = vadd.f32 %v67, %v131
    %v196 = vadd.f32 %v68, %v132
    %v197 = vadd.f32 %v69, %v133
    %v198 = vadd.f32 %v70, %v134
    %v199 = vadd.f32 %v71, %v135
    %v200 = vadd.f32 %v72, %v136
    %v201 = vadd.f32 %v73, %v137
    %v202 = vadd.f32 %v74, %v138
    %v203 = vadd.f32 %v75, %v139
    %v204 = vadd.f32 %v76, %v140
    %v205 = vadd.f32 %v77, %v141
    %v206 = vadd.f32 %v78, %v142
    %v207 = vadd.f32 %v79, %v143
    %v208 = vadd.f32 %v80, %v144
    %v209 = vadd.f32 %v81, %v145
    %v210 = vadd.f32 %v82, %v146
    %v211 = vadd.f32 %v83, %v147
    %v212 = vadd.f32 %v84, %v148
    %v213 = vadd.f32 %v85, %v149
    %v214 = vadd.f32 %v86, %v150
    %v215 = vadd.f32 %v87, %v151
    %v216 = vadd.f32 %v88, %v152
    %v217 = vadd.f32 %v89, %v153
    %v218 = vadd.f32 %v90, %v154
    %v219 = vadd.f32 %v91, %v155
    %v220 = vadd.f32 %v92, %v156
    %v221 = vadd.f32 %v93, %v157
    %v222 = vadd.f32 %v94, %v158
    %v223 = vadd.f32 %v95, %v159
    %v224 = vadd.f32 %v96, %v160
    %v225 = vadd.f32 %v97, %v161
    %v226 = vadd.f32 %v98, %v162
    %v227 = vadd.f32 %v99, %v163
    %v228 = vadd.f32 %v100, %v164
    %v229 = vadd.f32 %v101, %v165
    %v230 = vadd.f32 %v102, %v166
    %v231 = vadd.f32 %v103, %v167
    %v232 = vmul.f32 %v168, 0.5
    %v233 = vmul.f32 %v169, 0.5
    %v234 = vmul.f32 %v170, 0.5
    %v235 = vmul.f32 %v171, 0.5
    %v236 = vmul.f32 %v172, 0.5
    %v237 = vmul.f32 %v173, 0.5
    %v238 = vmul.f32 %v174, 0.5
    %v239 = vmul.f32 %v175, 0.5
    %v240 = vmul.f32 %v176, 0.5
    %v241 = vmul.f32 %v177, 0.5
    %v242 = vmul.f32 %v178, 0.5
    %v243 = vmul.f32 %v179, 0.5
    %v244 = vmul.f32 %v180, 0.5
    %v245 = vmul.f32 %v181, 0.5
    %v246 = vmul.f32 %v182, 0.5
    %v247 = vmul.f32 %v183, 0.5
    %v248 = vmul.f32 %v184, 0.5
    %v249 = vmul.f32 %v185, 0.5
    %v250 = vmul.f32 %v186, 0.5
    %v251 = vmul.f32 %v187, 0.5
    %v252 = vmul.f32 %v188, 0.5
    %v253 = vmul.f32 %v189, 0.5
    %v254 = vmul.f32 %v190, 0.5
    %v255 = vmul.f32 %v191, 0.5
    %v256 = vmul.f32 %v192, 0.5
    %v257 = vmul.f32 %v193, 0.5
    %v258 = vmul.f32 %v194, 0.5
    %v259 = vmul.f32 %v195, 0.5
    %v260 = vmul.f32 %v196, 0.5
    %v261 = vmul.f32 %v197, 0.5
    %v262 = vmul.f32 %v198, 0.5
    %v263 = vmul.f32 %v199, 0.5
    %v264 = vmul.f32 %v200, 0.5
    %v265 = vmul.f32 %v201, 0.5
    %v266 = vmul.f32 %v202, 0.5
    %v267 = vmul.f32 %v203, 0.5
    %v268 = vmul.f32 %v204, 0.5
    %v269 = vmul.f32 %v205, 0.5
    %v270 = vmul.f32 %v206, 0.5
    %v271 = vmul.f32 %v207, 0.5
    %v272 = vmul.f32 %v208, 0.5
    %v273 = vmul.f32 %v209, 0.5
    %v274 = vmul.f32 %v210, 0.5
    %v275 = vmul.f32 %v211, 0.5
    %v276 = vmul.f32 %v212, 0.5
    %v277 = vmul.f32 %v213, 0.5
    %v278 = vmul.f32 %v214, 0.5
    %v279 = vmul.f32 %v215, 0.5
    %v280 = vmul.f32 %v216, 0.5
    %v281 = vmul.f32 %v217, 0.5
    %v282 = vmul.f32 %v218, 0.5
    %v283 = vmul.f32 %v219, 0.5
    %v284 = vmul.f32 %v220, 0.5
    %v285 = vmul.f32 %v221, 0.5
    %v286 = vmul.f32 %v222, 0.5
    %v287 = vmul.f32 %v223, 0.5
    %v288 = vmul.f32 %v224, 0.5
    %v289 = vmul.f32 %v225, 0.5
    %v290 = vmul.f32 %v226, 0.5
    %v291 = vmul.f32 %v227, 0.5
    %v292 = vmul.f32 %v228, 0.5
    %v293 = vmul.f32 %v229, 0.5
    %v294 = vmul.f32 %v230, 0.5
    %v295 = vmul.f32 %v231, 0.5
    %296 = vst [vmem:[#allocation7] sm:$0xff] %v232
    %297 = vst [vmem:[#allocation7 + $0x8] sm:$0xff] %v233
    %298 = vst [vmem:[#allocation7 + $0x10] sm:$0xff] %v234
    %299 = vst [vmem:[#allocation7 + $0x18] sm:$0xff] %v235
    %300 = vst [vmem:[#allocation7 + $0x20] sm:$0xff] %v236
    %301 = vst [vmem:[#allocation7 + $0x28] sm:$0xff] %v237
    %302 = vst [vmem:[#allocation7 + $0x30] sm:$0xff] %v238
    %303 = vst [vmem:[#allocation7 + $0x38] sm:$0xff] %v239
    %304 = vst [vmem:[#allocation7 + $0x40] sm:$0xff] %v240
    %305 = vst [vmem:[#allocation7 + $0x48] sm:$0xff] %v241
    %306 = vst [vmem:[#allocation7 + $0x50] sm:$0xff] %v242
    %307 = vst [vmem:[#allocation7 + $0x58] sm:$0xff] %v243
    %308 = vst [vmem:[#allocation7 + $0x60] sm:$0xff] %v244
    %309 = vst [vmem:[#allocation7 + $0x68] sm:$0xff] %v245
    %310 = vst [vmem:[#allocation7 + $0x70] sm:$0xff] %v246
    %311 = vst [vmem:[#allocation7 + $0x78] sm:$0xff] %v247
    %312 = vst [vmem:[#allocation7 + $0x80] sm:$0xff] %v248
    %313 = vst [vmem:[#allocation7 + $0x88] sm:$0xff] %v249
    %314 = vst [vmem:[#allocation7 + $0x90] sm:$0xff] %v250
    %315 = vst [vmem:[#allocation7 + $0x98] sm:$0xff] %v251
    %316 = vst [vmem:[#allocation7 + $0xa0] sm:$0xff] %v252
    %317 = vst [vmem:[#allocation7 + $0xa8] sm:$0xff] %v253
    %318 = vst [vmem:[#allocation7 + $0xb0] sm:$0xff] %v254
    %319 = vst [vmem:[#allocation7 + $0xb8] sm:$0xff] %v255
    %320 = vst [vmem:[#allocation7 + $0xc0] sm:$0xff] %v256
    %321 = vst [vmem:[#allocation7 + $0xc8] sm:$0xff] %v257
    %322 = vst [vmem:[#allocation7 + $0xd0] sm:$0xff] %v258
    %323 = vst [vmem:[#allocation7 + $0xd8] sm:$0xff] %v259
    %324 = vst [vmem:[#allocation7 + $0xe0] sm:$0xff] %v260
    %325 = vst [vmem:[#allocation7 + $0xe8] sm:$0xff] %v261
    %326 = vst [vmem:[#allocation7 + $0xf0] sm:$0xff] %v262
    %327 = vst [vmem:[#allocation7 + $0xf8] sm:$0xff] %v263
    %328 = vst [vmem:[#allocation7 + $0x100] sm:$0xff] %v264
    %329 = vst [vmem:[#allocation7 + $0x108] sm:$0xff] %v265
    %330 = vst [vmem:[#allocation7 + $0x110] sm:$0xff] %v266
    %331 = vst [vmem:[#allocation7 + $0x118] sm:$0xff] %v267
    %332 = vst [vmem:[#allocation7 + $0x120] sm:$0xff] %v268
    %333 = vst [vmem:[#allocation7 + $0x128] sm:$0xff] %v269
    %334 = vst [vmem:[#allocation7 + $0x130] sm:$0xff] %v270
    %335 = vst [vmem:[#allocation7 + $0x138] sm:$0xff] %v271
    %336 = vst [vmem:[#allocation7 + $0x140] sm:$0xff] %v272
    %337 = vst [vmem:[#allocation7 + $0x148] sm:$0xff] %v273
    %338 = vst [vmem:[#allocation7 + $0x150] sm:$0xff] %v274
    %339 = vst [vmem:[#allocation7 + $0x158] sm:$0xff] %v275
    %340 = vst [vmem:[#allocation7 + $0x160] sm:$0xff] %v276
    %341 = vst [vmem:[#allocation7 + $0x168] sm:$0xff] %v277
    %342 = vst [vmem:[#allocation7 + $0x170] sm:$0xff] %v278
    %343 = vst [vmem:[#allocation7 + $0x178] sm:$0xff] %v279
    %344 = vst [vmem:[#allocation7 + $0x180] sm:$0xff] %v280
    %345 = vst [vmem:[#allocation7 + $0x188] sm:$0xff] %v281
    %346 = vst [vmem:[#allocation7 + $0x190] sm:$0xff] %v282
    %347 = vst [vmem:[#allocation7 + $0x198] sm:$0xff] %v283
    %348 = vst [vmem:[#allocation7 + $0x1a0] sm:$0xff] %v284
    %349 = vst [vmem:[#allocation7 + $0x1a8] sm:$0xff] %v285
    %350 = vst [vmem:[#allocation7 + $0x1b0] sm:$0xff] %v286
    %351 = vst [vmem:[#allocation7 + $0x1b8] sm:$0xff] %v287
    %352 = vst [vmem:[#allocation7 + $0x1c0] sm:$0xff] %v288
    %353 = vst [vmem:[#allocation7 + $0x1c8] sm:$0xff] %v289
    %354 = vst [vmem:[#allocation7 + $0x1d0] sm:$0xff] %v290
    %355 = vst [vmem:[#allocation7 + $0x1d8] sm:$0xff] %v291
    %356 = vst [vmem:[#allocation7 + $0x1e0] sm:$0xff] %v292
    %357 = vst [vmem:[#allocation7 + $0x1e8] sm:$0xff] %v293
    %358 = vst [vmem:[#allocation7 + $0x1f0] sm:$0xff] %v294
    %359 = vst [vmem:[#allocation7 + $0x1f8] sm:$0xff] %v295
    // Predicated region
    $region18: #{tpu_custom_call.1} parent=1 // pred_check
      _
    $region19: #{tpu_custom_call.1} parent=1 // pred_check_branch
      %361 = sbr.rel (0) target = $region21
    $region20: #{tpu_custom_call.1} parent=1 // pred_region
      %s363 = ssub.s32 8192, 8192
      %364 = vsyncadd [#allocation4], %s363
      %s365 = sshll.u32 [#allocation7], 4
      %s366 = int_to_ptr.vmem [resolvable:$true] %s365
      %371 = dma.vmem_to_hbm [thread:$0]  %s366, 8192, %s2, [#allocation4], 1024, 1024, 64
    $region21: #{tpu_custom_call.1} parent=1 // pred_fallthru
      _
    // Predicated region
    $region22: #{tpu_custom_call.1} parent=1 // pred_check
      _
    $region23: #{tpu_custom_call.1} parent=1 // pred_check_branch
      %373 = sbr.rel (0) target = $region25
    $region24: #{tpu_custom_call.1} parent=1 // pred_region
      %374 = dma.done [#allocation4], 8192
    $region25: #{tpu_custom_call.1} parent=1 // pred_fallthru
      _
    %375 = vsyncpa [#allocation3], 1
    %376 = vsyncpa [#allocation6], 1
    %377 = vsyncpa [#allocation4], 1

</llo_original>
